<compile_context>
chip_gen: v6e
topology: v6e:2x2x1
jax: 0.10.0
libtpu: 0.0.40
codegen_flags: <defaults>
</compile_context>

<pallas_src>
import jax
import jax.numpy as jnp
import numpy as np
from jax.experimental import pallas as pl
from jax.experimental.pallas import tpu as pltpu


def _round_up(x, m):
    return ((x + m - 1) // m) * m


# --------------------------------------------------------------------------
# Kernel (one row-tile per grid step):
#   wt_ref, mut_ref : (TM, F)   compute dtype (bf16)
#   w1a/w1b/w2      : (F, F)    compute dtype (VMEM-resident, constant index_map)
#   b12_ref         : (2, F)    f32  (row 0 = b1, row 1 = b2)
#   wf_ref          : (F, OUT)  compute dtype  (= w3 @ w_proj, exact fold)
#   out_ref         : (TM, OUT) f32
# --------------------------------------------------------------------------
def _ddg_readout_kernel(wt_ref, mut_ref, w1a_ref, w1b_ref, w2_ref, b12_ref, wf_ref,
                        out_ref):
    wt = wt_ref[...]
    mut = mut_ref[...]
    w1a = w1a_ref[...]
    w1b = w1b_ref[...]
    w2 = w2_ref[...]
    wf = wf_ref[...]
    b1 = b12_ref[0:1, :]                      # (1, F) f32
    b2 = b12_ref[1:2, :]

    # Layer 1 for both concat orders, from the split halves of w1 (no concat needed):
    #   mlp1([wt|mut]) = wt@w1a + mut@w1b + b1 ;  mlp1([mut|wt]) = mut@w1a + wt@w1b + b1
    wt_a = jnp.dot(wt, w1a, preferred_element_type=jnp.float32)
    wt_b = jnp.dot(wt, w1b, preferred_element_type=jnp.float32)
    mut_a = jnp.dot(mut, w1a, preferred_element_type=jnp.float32)
    mut_b = jnp.dot(mut, w1b, preferred_element_type=jnp.float32)
    h1_wm = jnp.maximum(wt_a + mut_b + b1, 0.0)
    h1_mw = jnp.maximum(mut_a + wt_b + b1, 0.0)

    # Layer 2 + ReLU, then the per-tile branch difference (f32).
    h2_wm = jnp.maximum(
        jnp.dot(h1_wm.astype(w2.dtype), w2, preferred_element_type=jnp.float32) + b2, 0.0)
    h2_mw = jnp.maximum(
        jnp.dot(h1_mw.astype(w2.dtype), w2, preferred_element_type=jnp.float32) + b2, 0.0)
    diff = h2_wm - h2_mw                       # (TM, F)

    # Folded Linear(F,F)+projection: diff @ (w3 @ w_proj); b3 cancels exactly in diff.
    out_ref[...] = jnp.dot(diff.astype(wf.dtype), wf, preferred_element_type=jnp.float32)


def ddg_attention_readout(node_feat_wt, node_feat_mut, params, mask=None, mode='cla',
                          compute_dtype=jnp.bfloat16, row_tile=512):
    """node_feat_wt/mut: (N, L, F) f32 -> per-residue ddg (N, L, OUT).

    `mask` is accepted but unused, exactly as in the PyTorch module's forward.
    """
    del mask
    n, l, f = node_feat_wt.shape
    nl = n * l

    if mode == 'cla':
        w_proj = params['w_cla']                             # (F, 4)
    elif mode == 'gau':
        w_proj = params['w_gau']                             # (F, 2)
    else:
        # TODO(synk): 'reg' mode requires SimpleReadoutAttention (att_project) and the
        # self.project MLP it feeds; SimpleReadoutAttention has no source in the spec.
        raise NotImplementedError("'reg' mode: SimpleReadoutAttention source unavailable")
    out_dim = w_proj.shape[1]

    # Row tiling: independent rows -> "parallel" grid axis (both TCs on v7x).
    # Tile budget (double-buffered bf16 inputs + resident weights) stays far below the
    # 16 MiB v5e scoped-VMEM default even at F=1024, so no vmem_limit override needed.
    if nl <= row_tile:
        nl_pad = _round_up(nl, 16)            # 16-row multiple for bf16 sublane packing
        tm = nl_pad
    else:
        nl_pad = _round_up(nl, row_tile)
        tm = row_tile
    grid = (nl_pad // tm,)

    wt2 = node_feat_wt.reshape(nl, f)
    mut2 = node_feat_mut.reshape(nl, f)
    if nl_pad != nl:
        pad = ((0, nl_pad - nl), (0, 0))
        wt2 = jnp.pad(wt2, pad)
        mut2 = jnp.pad(mut2, pad)
    wt2 = wt2.astype(compute_dtype)
    mut2 = mut2.astype(compute_dtype)

    # Split first Linear, fold third Linear into the bias-free projection (exact).
    w1a = params['w1'][:f, :].astype(compute_dtype)          # (F, F)
    w1b = params['w1'][f:, :].astype(compute_dtype)          # (F, F)
    w2 = params['w2'].astype(compute_dtype)                  # (F, F)
    w_fold = (params['w3'] @ w_proj).astype(compute_dtype)   # (F, OUT)
    b12 = jnp.stack([params['b1'], params['b2']], axis=0).astype(jnp.float32)  # (2, F)

    itemsize = jnp.dtype(compute_dtype).itemsize
    cost = pl.CostEstimate(
        flops=12 * nl_pad * f * f + 2 * nl_pad * f * out_dim,
        transcendentals=0,
        bytes_accessed=(2 * nl_pad * f + 3 * f * f + f * out_dim) * itemsize
                       + 2 * f * 4 + nl_pad * out_dim * 4,
    )

    out = pl.pallas_call(
        _ddg_readout_kernel,
        out_shape=jax.ShapeDtypeStruct((nl_pad, out_dim), jnp.float32),
        grid=grid,
        in_specs=[
            pl.BlockSpec((tm, f), lambda i: (i, 0)),          # wt row tile
            pl.BlockSpec((tm, f), lambda i: (i, 0)),          # mut row tile
            pl.BlockSpec((f, f), lambda i: (0, 0)),           # w1a (VMEM-resident)
            pl.BlockSpec((f, f), lambda i: (0, 0)),           # w1b
            pl.BlockSpec((f, f), lambda i: (0, 0)),           # w2
            pl.BlockSpec((2, f), lambda i: (0, 0)),           # b1/b2 (f32)
            pl.BlockSpec((f, out_dim), lambda i: (0, 0)),     # w3 @ w_proj
        ],
        out_specs=pl.BlockSpec((tm, out_dim), lambda i: (i, 0)),
        compiler_params=pltpu.CompilerParams(
            dimension_semantics=("parallel",)),
        cost_estimate=cost,
    )(wt2, mut2, w1a, w1b, w2, b12, w_fold)
    return out[:nl].reshape(n, l, out_dim)


# --------------------------------------------------------------------------
# Deterministic parameter init (shapes from the module __init__; (in, out) convention)
# --------------------------------------------------------------------------
def init_params(key, feat_dim):
    ks = jax.random.split(key, 8)
    f = feat_dim
    s1 = 1.0 / np.sqrt(2 * f)
    s = 1.0 / np.sqrt(f)
    return {
        'w1': jax.random.normal(ks[0], (2 * f, f), jnp.float32) * s1,
        'b1': jax.random.normal(ks[1], (f,), jnp.float32) * 0.01,
        'w2': jax.random.normal(ks[2], (f, f), jnp.float32) * s,
        'b2': jax.random.normal(ks[3], (f,), jnp.float32) * 0.01,
        'w3': jax.random.normal(ks[4], (f, f), jnp.float32) * s,
        'b3': jax.random.normal(ks[5], (f,), jnp.float32) * 0.01,
        'w_cla': jax.random.normal(ks[6], (f, 4), jnp.float32) * s,   # project_cla (no bias)
        'w_gau': jax.random.normal(ks[7], (f, 2), jnp.float32) * s,   # project_gau (no bias)
    }


if __name__ == "__main__":
    N, L, FEAT = 2, 8, 32
    key = jax.random.PRNGKey(0)
    k_wt, k_mut, k_mask, k_p = jax.random.split(key, 4)

    node_feat_wt = jax.random.normal(k_wt, (N, L, FEAT), jnp.float32)
    node_feat_mut = jax.random.normal(k_mut, (N, L, FEAT), jnp.float32)
    mask = jax.random.bernoulli(k_mask, 0.9, (N, L)).astype(jnp.float32)  # unused by forward

    params = init_params(k_p, FEAT)

    ddg_cla = ddg_attention_readout(node_feat_wt, node_feat_mut, params, mask=mask, mode='cla')
    ddg_gau = ddg_attention_readout(node_feat_wt, node_feat_mut, params, mask=mask, mode='gau')
    jax.block_until_ready(ddg_cla)
    jax.block_until_ready(ddg_gau)

    # ---- pure-f32 reference (unfolded, exactly as the PyTorch module computes it) ----
    def mlp(z):
        h = jnp.maximum(z @ params['w1'] + params['b1'], 0.0)
        h = jnp.maximum(h @ params['w2'] + params['b2'], 0.0)
        return h @ params['w3'] + params['b3']

    feat_wm = jnp.concatenate([node_feat_wt, node_feat_mut], axis=-1)
    feat_mw = jnp.concatenate([node_feat_mut, node_feat_wt], axis=-1)
    feat_diff = mlp(feat_wm) - mlp(feat_mw)
    ref_cla = feat_diff @ params['w_cla']
    ref_gau = feat_diff @ params['w_gau']

    # Kernel uses bf16 MXU operands (f32 accumulation): loose tolerance vs the exact
    # f32 module, tight tolerance vs a bf16-operand-consistent reference.
    np.testing.assert_allclose(np.asarray(ddg_cla), np.asarray(ref_cla), rtol=5e-2, atol=5e-2)
    np.testing.assert_allclose(np.asarray(ddg_gau), np.asarray(ref_gau), rtol=5e-2, atol=5e-2)

    c16 = jnp.bfloat16
    wt2 = node_feat_wt.reshape(-1, FEAT)
    mut2 = node_feat_mut.reshape(-1, FEAT)

    def mlp2_bf16(a, b):
        h = (jnp.dot(a.astype(c16), params['w1'][:FEAT].astype(c16),
                     preferred_element_type=jnp.float32)
             + jnp.dot(b.astype(c16), params['w1'][FEAT:].astype(c16),
                       preferred_element_type=jnp.float32)
             + params['b1'])
        h = jnp.maximum(h, 0.0)
        h = jnp.maximum(jnp.dot(h.astype(c16), params['w2'].astype(c16),
                                preferred_element_type=jnp.float32) + params['b2'], 0.0)
        return h

    diff16 = mlp2_bf16(wt2, mut2) - mlp2_bf16(mut2, wt2)
    ref16_cla = jnp.dot(diff16.astype(c16), (params['w3'] @ params['w_cla']).astype(c16),
                        preferred_element_type=jnp.float32).reshape(N, L, 4)
    ref16_gau = jnp.dot(diff16.astype(c16), (params['w3'] @ params['w_gau']).astype(c16),
                        preferred_element_type=jnp.float32).reshape(N, L, 2)
    np.testing.assert_allclose(np.asarray(ddg_cla), np.asarray(ref16_cla), rtol=2e-3, atol=2e-3)
    np.testing.assert_allclose(np.asarray(ddg_gau), np.asarray(ref16_gau), rtol=2e-3, atol=2e-3)

    print("KERNEL_OK")
</pallas_src>

<mosaic_0001>
module attributes {stable_mosaic.version = 11 : i64} {
  func.func @_ddg_readout_kernel(%arg0: i32, %arg1: memref<16x32xbf16, #tpu.memory_space<vmem>>, %arg2: memref<16x32xbf16, #tpu.memory_space<vmem>>, %arg3: memref<32x32xbf16, #tpu.memory_space<vmem>>, %arg4: memref<32x32xbf16, #tpu.memory_space<vmem>>, %arg5: memref<32x32xbf16, #tpu.memory_space<vmem>>, %arg6: memref<2x32xf32, #tpu.memory_space<vmem>>, %arg7: memref<32x4xbf16, #tpu.memory_space<vmem>>, %arg8: memref<16x4xf32, #tpu.memory_space<vmem>>) attributes {dimension_semantics = [#tpu.dimension_semantics<parallel>], iteration_bounds = array<i64: 1>, scalar_prefetch = 0 : i64, scratch_operands = 0 : i64, tpu.core_type = #tpu.core_type<tc>, window_params = [{transform_indices = @transform_0, window_bounds = array<i64: 16, 32>}, {transform_indices = @transform_1, window_bounds = array<i64: 16, 32>}, {pipeline_mode = #tpu.pipeline_mode<synchronous>, transform_indices = @transform_2, window_bounds = array<i64: 32, 32>}, {pipeline_mode = #tpu.pipeline_mode<synchronous>, transform_indices = @transform_3, window_bounds = array<i64: 32, 32>}, {pipeline_mode = #tpu.pipeline_mode<synchronous>, transform_indices = @transform_4, window_bounds = array<i64: 32, 32>}, {pipeline_mode = #tpu.pipeline_mode<synchronous>, transform_indices = @transform_5, window_bounds = array<i64: 2, 32>}, {pipeline_mode = #tpu.pipeline_mode<synchronous>, transform_indices = @transform_6, window_bounds = array<i64: 32, 4>}, {transform_indices = @transform_7, window_bounds = array<i64: 16, 4>}]} {
    %c0 = arith.constant 0 : index
    %c0_0 = arith.constant 0 : index
    %0 = vector.load %arg1[%c0, %c0_0] : memref<16x32xbf16, #tpu.memory_space<vmem>>, vector<16x32xbf16>
    %c0_1 = arith.constant 0 : index
    %c0_2 = arith.constant 0 : index
    %1 = vector.load %arg2[%c0_1, %c0_2] : memref<16x32xbf16, #tpu.memory_space<vmem>>, vector<16x32xbf16>
    %c0_3 = arith.constant 0 : index
    %c0_4 = arith.constant 0 : index
    %2 = vector.load %arg3[%c0_3, %c0_4] : memref<32x32xbf16, #tpu.memory_space<vmem>>, vector<32x32xbf16>
    %c0_5 = arith.constant 0 : index
    %c0_6 = arith.constant 0 : index
    %3 = vector.load %arg4[%c0_5, %c0_6] : memref<32x32xbf16, #tpu.memory_space<vmem>>, vector<32x32xbf16>
    %c0_7 = arith.constant 0 : index
    %c0_8 = arith.constant 0 : index
    %4 = vector.load %arg5[%c0_7, %c0_8] : memref<32x32xbf16, #tpu.memory_space<vmem>>, vector<32x32xbf16>
    %c0_9 = arith.constant 0 : index
    %c0_10 = arith.constant 0 : index
    %5 = vector.load %arg7[%c0_9, %c0_10] : memref<32x4xbf16, #tpu.memory_space<vmem>>, vector<32x4xbf16>
    %c0_11 = arith.constant 0 : index
    %c0_12 = arith.constant 0 : index
    %6 = vector.load %arg6[%c0_11, %c0_12] : memref<2x32xf32, #tpu.memory_space<vmem>>, vector<1x32xf32>
    %c1 = arith.constant 1 : index
    %c0_13 = arith.constant 0 : index
    %7 = vector.load %arg6[%c1, %c0_13] : memref<2x32xf32, #tpu.memory_space<vmem>>, vector<1x32xf32>
    %cst = arith.constant dense<0.000000e+00> : vector<16x32xf32>
    %8 = tpu.matmul %0, %2, %cst {dimension_numbers = #tpu.dot_dimension_numbers<[1], [0], [0], [1], [0, 0, 1, 1], [], []>} : vector<16x32xbf16>, vector<32x32xbf16>, vector<16x32xf32> -> vector<16x32xf32>
    %cst_14 = arith.constant dense<0.000000e+00> : vector<16x32xf32>
    %9 = tpu.matmul %0, %3, %cst_14 {dimension_numbers = #tpu.dot_dimension_numbers<[1], [0], [0], [1], [0, 0, 1, 1], [], []>} : vector<16x32xbf16>, vector<32x32xbf16>, vector<16x32xf32> -> vector<16x32xf32>
    %cst_15 = arith.constant dense<0.000000e+00> : vector<16x32xf32>
    %10 = tpu.matmul %1, %2, %cst_15 {dimension_numbers = #tpu.dot_dimension_numbers<[1], [0], [0], [1], [0, 0, 1, 1], [], []>} : vector<16x32xbf16>, vector<32x32xbf16>, vector<16x32xf32> -> vector<16x32xf32>
    %cst_16 = arith.constant dense<0.000000e+00> : vector<16x32xf32>
    %11 = tpu.matmul %1, %3, %cst_16 {dimension_numbers = #tpu.dot_dimension_numbers<[1], [0], [0], [1], [0, 0, 1, 1], [], []>} : vector<16x32xbf16>, vector<32x32xbf16>, vector<16x32xf32> -> vector<16x32xf32>
    %12 = arith.addf %8, %11 : vector<16x32xf32>
    %13 = vector.broadcast %6 : vector<1x32xf32> to vector<16x32xf32>
    %14 = arith.addf %12, %13 : vector<16x32xf32>
    %cst_17 = arith.constant 0.000000e+00 : f32
    %15 = vector.broadcast %cst_17 : f32 to vector<16x32xf32>
    %16 = arith.maximumf %14, %15 : vector<16x32xf32>
    %17 = arith.addf %10, %9 : vector<16x32xf32>
    %18 = vector.broadcast %6 : vector<1x32xf32> to vector<16x32xf32>
    %19 = arith.addf %17, %18 : vector<16x32xf32>
    %cst_18 = arith.constant 0.000000e+00 : f32
    %20 = vector.broadcast %cst_18 : f32 to vector<16x32xf32>
    %21 = arith.maximumf %19, %20 : vector<16x32xf32>
    %22 = arith.truncf %16 : vector<16x32xf32> to vector<16x32xbf16>
    %cst_19 = arith.constant dense<0.000000e+00> : vector<16x32xf32>
    %23 = tpu.matmul %22, %4, %cst_19 {dimension_numbers = #tpu.dot_dimension_numbers<[1], [0], [0], [1], [0, 0, 1, 1], [], []>} : vector<16x32xbf16>, vector<32x32xbf16>, vector<16x32xf32> -> vector<16x32xf32>
    %24 = vector.broadcast %7 : vector<1x32xf32> to vector<16x32xf32>
    %25 = arith.addf %23, %24 : vector<16x32xf32>
    %cst_20 = arith.constant 0.000000e+00 : f32
    %26 = vector.broadcast %cst_20 : f32 to vector<16x32xf32>
    %27 = arith.maximumf %25, %26 : vector<16x32xf32>
    %28 = arith.truncf %21 : vector<16x32xf32> to vector<16x32xbf16>
    %cst_21 = arith.constant dense<0.000000e+00> : vector<16x32xf32>
    %29 = tpu.matmul %28, %4, %cst_21 {dimension_numbers = #tpu.dot_dimension_numbers<[1], [0], [0], [1], [0, 0, 1, 1], [], []>} : vector<16x32xbf16>, vector<32x32xbf16>, vector<16x32xf32> -> vector<16x32xf32>
    %30 = vector.broadcast %7 : vector<1x32xf32> to vector<16x32xf32>
    %31 = arith.addf %29, %30 : vector<16x32xf32>
    %cst_22 = arith.constant 0.000000e+00 : f32
    %32 = vector.broadcast %cst_22 : f32 to vector<16x32xf32>
    %33 = arith.maximumf %31, %32 : vector<16x32xf32>
    %34 = arith.subf %27, %33 : vector<16x32xf32>
    %35 = arith.truncf %34 : vector<16x32xf32> to vector<16x32xbf16>
    %cst_23 = arith.constant dense<0.000000e+00> : vector<16x4xf32>
    %36 = tpu.matmul %35, %5, %cst_23 {dimension_numbers = #tpu.dot_dimension_numbers<[1], [0], [0], [1], [0, 0, 1, 1], [], []>} : vector<16x32xbf16>, vector<32x4xbf16>, vector<16x4xf32> -> vector<16x4xf32>
    %c0_24 = arith.constant 0 : index
    %c0_25 = arith.constant 0 : index
    %37 = vector.load %arg8[%c0_24, %c0_25] : memref<16x4xf32, #tpu.memory_space<vmem>>, vector<16x4xf32>
    tpu.vector_store %arg8[%c0_24, %c0_25], %36 {strides = array<i32>} : memref<16x4xf32, #tpu.memory_space<vmem>>, vector<16x4xf32>,
    return
  }
  func.func @transform_0(%arg0: i32) -> (i32, i32) {
    %c0_i32 = arith.constant 0 : i32
    %c0_i32_0 = arith.constant 0 : i32
    return %arg0, %c0_i32 : i32, i32
  }
  func.func @transform_1(%arg0: i32) -> (i32, i32) {
    %c0_i32 = arith.constant 0 : i32
    %c0_i32_0 = arith.constant 0 : i32
    return %arg0, %c0_i32 : i32, i32
  }
  func.func @transform_2(%arg0: i32) -> (i32, i32) {
    %c0_i32 = arith.constant 0 : i32
    %c0_i32_0 = arith.constant 0 : i32
    %c0_i32_1 = arith.constant 0 : i32
    return %c0_i32, %c0_i32_0 : i32, i32
  }
  func.func @transform_3(%arg0: i32) -> (i32, i32) {
    %c0_i32 = arith.constant 0 : i32
    %c0_i32_0 = arith.constant 0 : i32
    %c0_i32_1 = arith.constant 0 : i32
    return %c0_i32, %c0_i32_0 : i32, i32
  }
  func.func @transform_4(%arg0: i32) -> (i32, i32) {
    %c0_i32 = arith.constant 0 : i32
    %c0_i32_0 = arith.constant 0 : i32
    %c0_i32_1 = arith.constant 0 : i32
    return %c0_i32, %c0_i32_0 : i32, i32
  }
  func.func @transform_5(%arg0: i32) -> (i32, i32) {
    %c0_i32 = arith.constant 0 : i32
    %c0_i32_0 = arith.constant 0 : i32
    %c0_i32_1 = arith.constant 0 : i32
    return %c0_i32, %c0_i32_0 : i32, i32
  }
  func.func @transform_6(%arg0: i32) -> (i32, i32) {
    %c0_i32 = arith.constant 0 : i32
    %c0_i32_0 = arith.constant 0 : i32
    %c0_i32_1 = arith.constant 0 : i32
    return %c0_i32, %c0_i32_0 : i32, i32
  }
  func.func @transform_7(%arg0: i32) -> (i32, i32) {
    %c0_i32 = arith.constant 0 : i32
    %c0_i32_0 = arith.constant 0 : i32
    return %arg0, %c0_i32 : i32, i32
  }
}

</mosaic_0001>

<llo_original>
// kernel: tpu_custom_call.1
$region0: #{tpu_custom_call.1}
  #allocation0 [shape = 'u32[]', space=smem, size = 0x4, offset = 0x4, fixed_abs, tag = 'smem constant byte address 0x4 - core index']
  #allocation1 [shape = 'u32[144,128]{1,0:T(1,128)}', space=vmem, size = 0x12000, scoped, tag = 'internal scratch']
  %s0 = inlined_call_operand.hbm [shape: bf16[16,32], index: 0, kind: input, shape index: {}]
  %s1 = inlined_call_operand.hbm [shape: bf16[16,32], index: 1, kind: input, shape index: {}]
  %s2 = inlined_call_operand.vmem [shape: bf16[32,32], index: 2, kind: input, shape index: {}]
  %s3 = inlined_call_operand.hbm [shape: bf16[32,32], index: 3, kind: input, shape index: {}]
  %s4 = inlined_call_operand.hbm [shape: bf16[32,32], index: 4, kind: input, shape index: {}]
  %s5 = inlined_call_operand.vmem [shape: f32[2,32], index: 5, kind: input, shape index: {}]
  %s6 = inlined_call_operand.vmem [shape: bf16[32,4], index: 6, kind: input, shape index: {}]
  %s7 = inlined_call_operand.vmem [shape: f32[16,4], index: 7, kind: output, shape index: {}]
  %s8 = sld [smem:[#allocation0]]
  $region54: #{tpu_custom_call.1} parent=0
    _
  %s10 = ssub.s32 1, %s8
  %s11 = scalar_select 0, %s10, %s8
  $region1: #{tpu_custom_call.1} parent=0
    #allocation2 [shape = 'u8[4096]{0}', space=vmem, size = 0x1000, scoped, tag = 'input window, operand 0, single buffered']
    #allocation3 [shape = 's32[1]{0}', space=sflag, size = 0x4, scoped, tag = 'scoped memory for tpu_custom_call.1']
    #allocation4 [shape = 'u8[4096]{0}', space=vmem, size = 0x1000, scoped, tag = 'input window, operand 1, single buffered']
    #allocation5 [shape = 's32[1]{0}', space=sflag, size = 0x4, scoped, tag = 'scoped memory for tpu_custom_call.1']
    #allocation6 [shape = 'u8[8192]{0}', space=vmem, size = 0x2000, scoped, tag = 'input window, operand 3, single buffered']
    #allocation7 [shape = 'u8[8192]{0}', space=vmem, size = 0x2000, scoped, tag = 'input window, operand 4, single buffered']
    #allocation8 [shape = 's32[1]{0}', space=sflag, size = 0x4, scoped, tag = 'scoped memory for tpu_custom_call.1']
    %12 = vsyncpa [#allocation3], 0
    %13 = vsyncpa [#allocation5], 0
    %14 = vsyncpa [#allocation8], 0
    // Predicated region
    $region2: #{tpu_custom_call.1} parent=1 // pred_check
      _
    $region3: #{tpu_custom_call.1} parent=1 // pred_check_branch
      %16 = sbr.rel (0) target = $region5
    $region4: #{tpu_custom_call.1} parent=1 // pred_region
      %s18 = ssub.s32 128, 128
      %19 = vsyncadd [#allocation3], %s18
      %s20 = sshll.u32 [#allocation2], 4
      %s21 = int_to_ptr.vmem [resolvable:$true] %s20
      %26 = dma.hbm_to_vmem [thread:$0]  %s0, 128, %s21, [#allocation3], 64, 64, 4
    $region5: #{tpu_custom_call.1} parent=1 // pred_fallthru
      _
    // Predicated region
    $region6: #{tpu_custom_call.1} parent=1 // pred_check
      _
    $region7: #{tpu_custom_call.1} parent=1 // pred_check_branch
      %28 = sbr.rel (0) target = $region9
    $region8: #{tpu_custom_call.1} parent=1 // pred_region
      %s30 = ssub.s32 128, 128
      %31 = vsyncadd [#allocation5], %s30
      %s32 = sshll.u32 [#allocation4], 4
      %s33 = int_to_ptr.vmem [resolvable:$true] %s32
      %38 = dma.hbm_to_vmem [thread:$0]  %s1, 128, %s33, [#allocation5], 64, 64, 4
    $region9: #{tpu_custom_call.1} parent=1 // pred_fallthru
      _
    // Predicated region
    $region10: #{tpu_custom_call.1} parent=1 // pred_check
      _
    $region11: #{tpu_custom_call.1} parent=1 // pred_check_branch
      %40 = sbr.rel (0) target = $region13
    $region12: #{tpu_custom_call.1} parent=1 // pred_region
      _
    $region13: #{tpu_custom_call.1} parent=1 // pred_fallthru
      _
    // Predicated region
    $region14: #{tpu_custom_call.1} parent=1 // pred_check
      _
    $region15: #{tpu_custom_call.1} parent=1 // pred_check_branch
      %42 = sbr.rel (0) target = $region17
    $region16: #{tpu_custom_call.1} parent=1 // pred_region
      %s44 = ssub.s32 256, 256
      %45 = vsyncadd [#allocation5], %s44
      %s46 = sshll.u32 [#allocation6], 4
      %s47 = int_to_ptr.vmem [resolvable:$true] %s46
      %52 = dma.hbm_to_vmem [thread:$0]  %s3, 256, %s47, [#allocation5], 64, 64, 4
    $region17: #{tpu_custom_call.1} parent=1 // pred_fallthru
      _
    // Predicated region
    $region18: #{tpu_custom_call.1} parent=1 // pred_check
      _
    $region19: #{tpu_custom_call.1} parent=1 // pred_check_branch
      %54 = sbr.rel (0) target = $region21
    $region20: #{tpu_custom_call.1} parent=1 // pred_region
      %s56 = ssub.s32 256, 256
      %57 = vsyncadd [#allocation8], %s56
      %s58 = sshll.u32 [#allocation7], 4
      %s59 = int_to_ptr.vmem [resolvable:$true] %s58
      %64 = dma.hbm_to_vmem [thread:$0]  %s4, 256, %s59, [#allocation8], 64, 64, 4
    $region21: #{tpu_custom_call.1} parent=1 // pred_fallthru
      _
    // Predicated region
    $region22: #{tpu_custom_call.1} parent=1 // pred_check
      _
    $region23: #{tpu_custom_call.1} parent=1 // pred_check_branch
      %66 = sbr.rel (0) target = $region25
    $region24: #{tpu_custom_call.1} parent=1 // pred_region
      _
    $region25: #{tpu_custom_call.1} parent=1 // pred_fallthru
      _
    // Predicated region
    $region26: #{tpu_custom_call.1} parent=1 // pred_check
      _
    $region27: #{tpu_custom_call.1} parent=1 // pred_check_branch
      %68 = sbr.rel (0) target = $region29
    $region28: #{tpu_custom_call.1} parent=1 // pred_region
      _
    $region29: #{tpu_custom_call.1} parent=1 // pred_fallthru
      _
    // Predicated region
    $region30: #{tpu_custom_call.1} parent=1 // pred_check
      _
    $region31: #{tpu_custom_call.1} parent=1 // pred_check_branch
      %70 = sbr.rel (0) target = $region33
    $region32: #{tpu_custom_call.1} parent=1 // pred_region
      %71 = dma.done [#allocation3], 128
    $region33: #{tpu_custom_call.1} parent=1 // pred_fallthru
      _
    // Predicated region
    $region34: #{tpu_custom_call.1} parent=1 // pred_check
      _
    $region35: #{tpu_custom_call.1} parent=1 // pred_check_branch
      %73 = sbr.rel (0) target = $region37
    $region36: #{tpu_custom_call.1} parent=1 // pred_region
      %74 = dma.done [#allocation5], 128
    $region37: #{tpu_custom_call.1} parent=1 // pred_fallthru
      _
    // Predicated region
    $region38: #{tpu_custom_call.1} parent=1 // pred_check
      _
    $region39: #{tpu_custom_call.1} parent=1 // pred_check_branch
      %76 = sbr.rel (0) target = $region41
    $region40: #{tpu_custom_call.1} parent=1 // pred_region
      %77 = dma.done [#allocation5], 256
    $region41: #{tpu_custom_call.1} parent=1 // pred_fallthru
      _
    // Predicated region
    $region42: #{tpu_custom_call.1} parent=1 // pred_check
      _
    $region43: #{tpu_custom_call.1} parent=1 // pred_check_branch
      %79 = sbr.rel (0) target = $region45
    $region44: #{tpu_custom_call.1} parent=1 // pred_region
      %80 = dma.done [#allocation8], 256
    $region45: #{tpu_custom_call.1} parent=1 // pred_fallthru
      _
    %v82 = vld [vmem:[#allocation2] sm:$0xf]
    %v83 = vld [vmem:[#allocation2 + $0x4] sm:$0xf]
    %v84 = vld [vmem:[#allocation4] sm:$0xf]
    %v85 = vld [vmem:[#allocation4 + $0x4] sm:$0xf]
    %v86 = vld [vmem:[%s2] sm:$0xf]
    %v87 = vld [vmem:[%s2 + $0x4] sm:$0xf]
    %v88 = vld [vmem:[%s2 + $0x8] sm:$0xf]
    %v89 = vld [vmem:[%s2 + $0xc] sm:$0xf]
    %v90 = vld [vmem:[#allocation6] sm:$0xf]
    %v91 = vld [vmem:[#allocation6 + $0x4] sm:$0xf]
    %v92 = vld [vmem:[#allocation6 + $0x8] sm:$0xf]
    %v93 = vld [vmem:[#allocation6 + $0xc] sm:$0xf]
    %v94 = vld [vmem:[#allocation7] sm:$0xf]
    %v95 = vld [vmem:[#allocation7 + $0x4] sm:$0xf]
    %v96 = vld [vmem:[#allocation7 + $0x8] sm:$0xf]
    %v97 = vld [vmem:[#allocation7 + $0xc] sm:$0xf]
    %v98 = vld [vmem:[%s6] sm:$0xf]
    %v99 = vld [vmem:[%s6 + $0x4] sm:$0xf]
    %v100 = vld [vmem:[%s6 + $0x8] sm:$0xf]
    %v101 = vld [vmem:[%s6 + $0xc] sm:$0xf]
    %v102 = vld [vmem:[%s5] sm:$0x1]
    %v103 = vld [vmem:[%s5 + $0x1] sm:$0x1]
    %v106 = vunpack.c.l.b16 %v82
    %v107 = vunpack.c.l.b16 %v83
    %v108 = vpack.c.b16 %v107, %v106
    %v113 = vunpack.c.l.b16 %v90
    %v114 = vunpack.c.l.b16 %v91
    %v115 = vunpack.c.l.b16 %v92
    %v116 = vunpack.c.l.b16 %v93
    %v117 = vpack.c.b16 %v114, %v113
    %v118 = vpack.c.b16 %v116, %v115
    %vm121 = vcmask 261120
    %v123 = vsel %vm121, %v108, 0
    %125 = vmatprep.subr.bf16.mxu0 0
    %126 = vmatpush1.bf16.msra.mxu0 0
    %127 = vmatprep.subr.bf16.mxu0 0
    %128 = vmatpush1.bf16.msra.mxu0 0
    %129 = vmatprep.subr.bf16.mxu0 0
    %130 = vmatpush1.bf16.msra.mxu0 0
    %131 = vmatprep.subr.bf16.mxu0 0
    %132 = vmatpush1.bf16.msra.mxu0 0
    %133 = vmatprep.subr.bf16.mxu0 0
    %134 = vmatpush1.bf16.msra.mxu0 0
    %135 = vmatprep.subr.bf16.mxu0 0
    %136 = vmatpush1.bf16.msra.mxu0 0
    %137 = vmatprep.subr.bf16.mxu0 0
    %138 = vmatpush1.bf16.msra.mxu0 %v118
    %139 = vmatprep.subr.bf16.mxu0 0
    %140 = vmatpush1.bf16.msra.mxu0 %v117
    %141 = vmatprep.subr.bf16.mxu0 0
    %142 = vmatpush2.bf16.msra.mxu0 0
    %143 = vmatprep.subr.bf16.mxu0 0
    %144 = vmatpush2.bf16.msra.mxu0 0
    %145 = vmatprep.subr.bf16.mxu0 0
    %146 = vmatpush2.bf16.msra.mxu0 0
    %147 = vmatprep.subr.bf16.mxu0 0
    %148 = vmatpush2.bf16.msra.mxu0 0
    %149 = vmatprep.subr.bf16.mxu0 0
    %150 = vmatpush2.bf16.msra.mxu0 0
    %151 = vmatprep.subr.bf16.mxu0 0
    %152 = vmatpush2.bf16.msra.mxu0 0
    %153 = vmatprep.subr.bf16.mxu0 0
    %154 = vmatpush2.bf16.msra.mxu0 0
    %155 = vmatprep.subr.bf16.mxu0 0
    %156 = vmatpush2.bf16.msra.mxu0 0
    %157 = vmatprep.mubr.bf16.mxu0 0
    %158 = vmatmul.mubr.bf16.gmra.mxu0 %v123
    %v159 = vpop.f32.mrf.mxu0
    %v160 = vadd.f32 0.0, %v159
    %v161 = vpop.f32.mrf.mxu0
    %v162 = vpop.f32.mrf.mxu0
    %v163 = vadd.f32 0.0, %v162
    %v164 = vpop.f32.mrf.mxu0
    %165 = vdwg.mxu0
    %v168 = vunpack.c.l.b16 %v84
    %v169 = vunpack.c.l.b16 %v85
    %v170 = vpack.c.b16 %v169, %v168
    %v172 = vsel %vm121, %v170, 0
    %174 = vmatprep.subr.bf16.mxu0 0
    %175 = vmatpush1.bf16.msra.mxu0 0
    %176 = vmatprep.subr.bf16.mxu0 0
    %177 = vmatpush1.bf16.msra.mxu0 0
    %178 = vmatprep.subr.bf16.mxu0 0
    %179 = vmatpush1.bf16.msra.mxu0 0
    %180 = vmatprep.subr.bf16.mxu0 0
    %181 = vmatpush1.bf16.msra.mxu0 0
    %182 = vmatprep.subr.bf16.mxu0 0
    %183 = vmatpush1.bf16.msra.mxu0 0
    %184 = vmatprep.subr.bf16.mxu0 0
    %185 = vmatpush1.bf16.msra.mxu0 0
    %186 = vmatprep.subr.bf16.mxu0 0
    %187 = vmatpush1.bf16.msra.mxu0 %v118
    %188 = vmatprep.subr.bf16.mxu0 0
    %189 = vmatpush1.bf16.msra.mxu0 %v117
    %190 = vmatprep.subr.bf16.mxu0 0
    %191 = vmatpush2.bf16.msra.mxu0 0
    %192 = vmatprep.subr.bf16.mxu0 0
    %193 = vmatpush2.bf16.msra.mxu0 0
    %194 = vmatprep.subr.bf16.mxu0 0
    %195 = vmatpush2.bf16.msra.mxu0 0
    %196 = vmatprep.subr.bf16.mxu0 0
    %197 = vmatpush2.bf16.msra.mxu0 0
    %198 = vmatprep.subr.bf16.mxu0 0
    %199 = vmatpush2.bf16.msra.mxu0 0
    %200 = vmatprep.subr.bf16.mxu0 0
    %201 = vmatpush2.bf16.msra.mxu0 0
    %202 = vmatprep.subr.bf16.mxu0 0
    %203 = vmatpush2.bf16.msra.mxu0 0
    %204 = vmatprep.subr.bf16.mxu0 0
    %205 = vmatpush2.bf16.msra.mxu0 0
    %206 = vmatprep.mubr.bf16.mxu0 0
    %207 = vmatmul.mubr.bf16.gmra.mxu0 %v172
    %v208 = vpop.f32.mrf.mxu0
    %v209 = vadd.f32 0.0, %v208
    %v210 = vpop.f32.mrf.mxu0
    %v211 = vpop.f32.mrf.mxu0
    %v212 = vadd.f32 0.0, %v211
    %v213 = vpop.f32.mrf.mxu0
    %214 = vdwg.mxu0
    %v219 = vunpack.c.l.b16 %v86
    %v220 = vunpack.c.l.b16 %v87
    %v221 = vunpack.c.l.b16 %v88
    %v222 = vunpack.c.l.b16 %v89
    %v223 = vpack.c.b16 %v220, %v219
    %v224 = vpack.c.b16 %v222, %v221
    %227 = vmatprep.subr.bf16.mxu0 0
    %228 = vmatpush1.bf16.msra.mxu0 0
    %229 = vmatprep.subr.bf16.mxu0 0
    %230 = vmatpush1.bf16.msra.mxu0 0
    %231 = vmatprep.subr.bf16.mxu0 0
    %232 = vmatpush1.bf16.msra.mxu0 0
    %233 = vmatprep.subr.bf16.mxu0 0
    %234 = vmatpush1.bf16.msra.mxu0 0
    %235 = vmatprep.subr.bf16.mxu0 0
    %236 = vmatpush1.bf16.msra.mxu0 0
    %237 = vmatprep.subr.bf16.mxu0 0
    %238 = vmatpush1.bf16.msra.mxu0 0
    %239 = vmatprep.subr.bf16.mxu0 0
    %240 = vmatpush1.bf16.msra.mxu0 %v224
    %241 = vmatprep.subr.bf16.mxu0 0
    %242 = vmatpush1.bf16.msra.mxu0 %v223
    %243 = vmatprep.subr.bf16.mxu0 0
    %244 = vmatpush2.bf16.msra.mxu0 0
    %245 = vmatprep.subr.bf16.mxu0 0
    %246 = vmatpush2.bf16.msra.mxu0 0
    %247 = vmatprep.subr.bf16.mxu0 0
    %248 = vmatpush2.bf16.msra.mxu0 0
    %249 = vmatprep.subr.bf16.mxu0 0
    %250 = vmatpush2.bf16.msra.mxu0 0
    %251 = vmatprep.subr.bf16.mxu0 0
    %252 = vmatpush2.bf16.msra.mxu0 0
    %253 = vmatprep.subr.bf16.mxu0 0
    %254 = vmatpush2.bf16.msra.mxu0 0
    %255 = vmatprep.subr.bf16.mxu0 0
    %256 = vmatpush2.bf16.msra.mxu0 0
    %257 = vmatprep.subr.bf16.mxu0 0
    %258 = vmatpush2.bf16.msra.mxu0 0
    %259 = vmatprep.mubr.bf16.mxu0 0
    %260 = vmatmul.mubr.bf16.gmra.mxu0 %v123
    %v261 = vpop.f32.mrf.mxu0
    %v262 = vadd.f32 %v209, %v261
    %v263 = vpop.f32.mrf.mxu0
    %v264 = vpop.f32.mrf.mxu0
    %v265 = vadd.f32 %v212, %v264
    %v266 = vpop.f32.mrf.mxu0
    %267 = vdwg.mxu0
    %v268 = vlaneseq
    %v269 = vshrl.u32 %v268, 7
    %v270 = vsub.s32 0, %v269
    %v271 = vrot.slane %v102, %v270
    %v272 = vadd.f32 %v262, %v271
    %v273 = vadd.f32 %v265, %v271
    %v274 = vmax.f32 %v272, 0.0
    %v275 = vmax.f32 %v273, 0.0
    %276 = vmatprep.subr.bf16.mxu0 0
    %277 = vmatpush1.bf16.msra.mxu0 0
    %278 = vmatprep.subr.bf16.mxu0 0
    %279 = vmatpush1.bf16.msra.mxu0 0
    %280 = vmatprep.subr.bf16.mxu0 0
    %281 = vmatpush1.bf16.msra.mxu0 0
    %282 = vmatprep.subr.bf16.mxu0 0
    %283 = vmatpush1.bf16.msra.mxu0 0
    %284 = vmatprep.subr.bf16.mxu0 0
    %285 = vmatpush1.bf16.msra.mxu0 0
    %286 = vmatprep.subr.bf16.mxu0 0
    %287 = vmatpush1.bf16.msra.mxu0 0
    %288 = vmatprep.subr.bf16.mxu0 0
    %289 = vmatpush1.bf16.msra.mxu0 %v224
    %290 = vmatprep.subr.bf16.mxu0 0
    %291 = vmatpush1.bf16.msra.mxu0 %v223
    %292 = vmatprep.subr.bf16.mxu0 0
    %293 = vmatpush2.bf16.msra.mxu0 0
    %294 = vmatprep.subr.bf16.mxu0 0
    %295 = vmatpush2.bf16.msra.mxu0 0
    %296 = vmatprep.subr.bf16.mxu0 0
    %297 = vmatpush2.bf16.msra.mxu0 0
    %298 = vmatprep.subr.bf16.mxu0 0
    %299 = vmatpush2.bf16.msra.mxu0 0
    %300 = vmatprep.subr.bf16.mxu0 0
    %301 = vmatpush2.bf16.msra.mxu0 0
    %302 = vmatprep.subr.bf16.mxu0 0
    %303 = vmatpush2.bf16.msra.mxu0 0
    %304 = vmatprep.subr.bf16.mxu0 0
    %305 = vmatpush2.bf16.msra.mxu0 0
    %306 = vmatprep.subr.bf16.mxu0 0
    %307 = vmatpush2.bf16.msra.mxu0 0
    %308 = vmatprep.mubr.bf16.mxu0 0
    %309 = vmatmul.mubr.bf16.gmra.mxu0 %v172
    %v310 = vpop.f32.mrf.mxu0
    %v311 = vadd.f32 %v160, %v310
    %v312 = vpop.f32.mrf.mxu0
    %v313 = vpop.f32.mrf.mxu0
    %v314 = vadd.f32 %v163, %v313
    %v315 = vpop.f32.mrf.mxu0
    %316 = vdwg.mxu0
    %v317 = vadd.f32 %v311, %v271
    %v318 = vadd.f32 %v314, %v271
    %v319 = vmax.f32 %v317, 0.0
    %v320 = vmax.f32 %v318, 0.0
    %v321 = vpack.c.bf16 %v275, %v274
    %v322 = vlaneseq
    %v323 = vshrl.u32 %v322, 7
    %v324 = vsub.s32 0, %v323
    %v325 = vrot.slane %v103, %v324
    %v330 = vunpack.c.l.b16 %v94
    %v331 = vunpack.c.l.b16 %v95
    %v332 = vunpack.c.l.b16 %v96
    %v333 = vunpack.c.l.b16 %v97
    %v334 = vpack.c.b16 %v331, %v330
    %v335 = vpack.c.b16 %v333, %v332
    %v339 = vsel %vm121, %v321, 0
    %341 = vmatprep.subr.bf16.mxu0 0
    %342 = vmatpush1.bf16.msra.mxu0 0
    %343 = vmatprep.subr.bf16.mxu0 0
    %344 = vmatpush1.bf16.msra.mxu0 0
    %345 = vmatprep.subr.bf16.mxu0 0
    %346 = vmatpush1.bf16.msra.mxu0 0
    %347 = vmatprep.subr.bf16.mxu0 0
    %348 = vmatpush1.bf16.msra.mxu0 0
    %349 = vmatprep.subr.bf16.mxu0 0
    %350 = vmatpush1.bf16.msra.mxu0 0
    %351 = vmatprep.subr.bf16.mxu0 0
    %352 = vmatpush1.bf16.msra.mxu0 0
    %353 = vmatprep.subr.bf16.mxu0 0
    %354 = vmatpush1.bf16.msra.mxu0 %v335
    %355 = vmatprep.subr.bf16.mxu0 0
    %356 = vmatpush1.bf16.msra.mxu0 %v334
    %357 = vmatprep.subr.bf16.mxu0 0
    %358 = vmatpush2.bf16.msra.mxu0 0
    %359 = vmatprep.subr.bf16.mxu0 0
    %360 = vmatpush2.bf16.msra.mxu0 0
    %361 = vmatprep.subr.bf16.mxu0 0
    %362 = vmatpush2.bf16.msra.mxu0 0
    %363 = vmatprep.subr.bf16.mxu0 0
    %364 = vmatpush2.bf16.msra.mxu0 0
    %365 = vmatprep.subr.bf16.mxu0 0
    %366 = vmatpush2.bf16.msra.mxu0 0
    %367 = vmatprep.subr.bf16.mxu0 0
    %368 = vmatpush2.bf16.msra.mxu0 0
    %369 = vmatprep.subr.bf16.mxu0 0
    %370 = vmatpush2.bf16.msra.mxu0 0
    %371 = vmatprep.subr.bf16.mxu0 0
    %372 = vmatpush2.bf16.msra.mxu0 0
    %373 = vmatprep.mubr.bf16.mxu0 0
    %374 = vmatmul.mubr.bf16.gmra.mxu0 %v339
    %v375 = vpop.f32.mrf.mxu0
    %v376 = vadd.f32 %v325, %v375
    %v377 = vpop.f32.mrf.mxu0
    %v378 = vpop.f32.mrf.mxu0
    %v379 = vadd.f32 %v325, %v378
    %v380 = vpop.f32.mrf.mxu0
    %381 = vdwg.mxu0
    %v382 = vmax.f32 %v376, 0.0
    %v383 = vmax.f32 %v379, 0.0
    %v384 = vpack.c.bf16 %v320, %v319
    %v386 = vsel %vm121, %v384, 0
    %388 = vmatprep.subr.bf16.mxu0 0
    %389 = vmatpush1.bf16.msra.mxu0 0
    %390 = vmatprep.subr.bf16.mxu0 0
    %391 = vmatpush1.bf16.msra.mxu0 0
    %392 = vmatprep.subr.bf16.mxu0 0
    %393 = vmatpush1.bf16.msra.mxu0 0
    %394 = vmatprep.subr.bf16.mxu0 0
    %395 = vmatpush1.bf16.msra.mxu0 0
    %396 = vmatprep.subr.bf16.mxu0 0
    %397 = vmatpush1.bf16.msra.mxu0 0
    %398 = vmatprep.subr.bf16.mxu0 0
    %399 = vmatpush1.bf16.msra.mxu0 0
    %400 = vmatprep.subr.bf16.mxu0 0
    %401 = vmatpush1.bf16.msra.mxu0 %v335
    %402 = vmatprep.subr.bf16.mxu0 0
    %403 = vmatpush1.bf16.msra.mxu0 %v334
    %404 = vmatprep.subr.bf16.mxu0 0
    %405 = vmatpush2.bf16.msra.mxu0 0
    %406 = vmatprep.subr.bf16.mxu0 0
    %407 = vmatpush2.bf16.msra.mxu0 0
    %408 = vmatprep.subr.bf16.mxu0 0
    %409 = vmatpush2.bf16.msra.mxu0 0
    %410 = vmatprep.subr.bf16.mxu0 0
    %411 = vmatpush2.bf16.msra.mxu0 0
    %412 = vmatprep.subr.bf16.mxu0 0
    %413 = vmatpush2.bf16.msra.mxu0 0
    %414 = vmatprep.subr.bf16.mxu0 0
    %415 = vmatpush2.bf16.msra.mxu0 0
    %416 = vmatprep.subr.bf16.mxu0 0
    %417 = vmatpush2.bf16.msra.mxu0 0
    %418 = vmatprep.subr.bf16.mxu0 0
    %419 = vmatpush2.bf16.msra.mxu0 0
    %420 = vmatprep.mubr.bf16.mxu0 0
    %421 = vmatmul.mubr.bf16.gmra.mxu0 %v386
    %v422 = vpop.f32.mrf.mxu0
    %v423 = vadd.f32 %v325, %v422
    %v424 = vpop.f32.mrf.mxu0
    %v425 = vpop.f32.mrf.mxu0
    %v426 = vadd.f32 %v325, %v425
    %v427 = vpop.f32.mrf.mxu0
    %428 = vdwg.mxu0
    %v429 = vmax.f32 %v423, 0.0
    %v430 = vmax.f32 %v426, 0.0
    %v431 = vsub.f32 %v382, %v429
    %v432 = vsub.f32 %v383, %v430
    %v433 = vpack.c.bf16 %v432, %v431
    %v438 = vunpack.c.l.b16 %v98
    %v439 = vunpack.c.l.b16 %v99
    %v440 = vunpack.c.l.b16 %v100
    %v441 = vunpack.c.l.b16 %v101
    %v442 = vpack.c.b16 %v439, %v438
    %v443 = vpack.c.b16 %v441, %v440
    %v447 = vsel %vm121, %v433, 0
    %449 = vmatprep.subr.bf16.mxu0 0
    %450 = vmatpush1.bf16.msra.mxu0 0
    %451 = vmatprep.subr.bf16.mxu0 0
    %452 = vmatpush1.bf16.msra.mxu0 0
    %453 = vmatprep.subr.bf16.mxu0 0
    %454 = vmatpush1.bf16.msra.mxu0 0
    %455 = vmatprep.subr.bf16.mxu0 0
    %456 = vmatpush1.bf16.msra.mxu0 0
    %457 = vmatprep.subr.bf16.mxu0 0
    %458 = vmatpush1.bf16.msra.mxu0 0
    %459 = vmatprep.subr.bf16.mxu0 0
    %460 = vmatpush1.bf16.msra.mxu0 0
    %461 = vmatprep.subr.bf16.mxu0 0
    %462 = vmatpush1.bf16.msra.mxu0 %v443
    %463 = vmatprep.subr.bf16.mxu0 0
    %464 = vmatpush1.bf16.msra.mxu0 %v442
    %465 = vmatprep.subr.bf16.mxu0 0
    %466 = vmatpush2.bf16.msra.mxu0 0
    %467 = vmatprep.subr.bf16.mxu0 0
    %468 = vmatpush2.bf16.msra.mxu0 0
    %469 = vmatprep.subr.bf16.mxu0 0
    %470 = vmatpush2.bf16.msra.mxu0 0
    %471 = vmatprep.subr.bf16.mxu0 0
    %472 = vmatpush2.bf16.msra.mxu0 0
    %473 = vmatprep.subr.bf16.mxu0 0
    %474 = vmatpush2.bf16.msra.mxu0 0
    %475 = vmatprep.subr.bf16.mxu0 0
    %476 = vmatpush2.bf16.msra.mxu0 0
    %477 = vmatprep.subr.bf16.mxu0 0
    %478 = vmatpush2.bf16.msra.mxu0 0
    %479 = vmatprep.subr.bf16.mxu0 0
    %480 = vmatpush2.bf16.msra.mxu0 0
    %481 = vmatprep.mubr.bf16.mxu0 0
    %482 = vmatmul.mubr.bf16.gmra.mxu0 %v447
    %v483 = vpop.f32.mrf.mxu0
    %v484 = vadd.f32 0.0, %v483
    %v485 = vpop.f32.mrf.mxu0
    %v486 = vpop.f32.mrf.mxu0
    %v487 = vadd.f32 0.0, %v486
    %v488 = vpop.f32.mrf.mxu0
    %489 = vdwg.mxu0
    %vm490 = vcmask 31744
    %491 = vst.msk [vmem:[%s7] sm:$0xff] %vm490, %v484
    %492 = vst.msk [vmem:[%s7 + $0x8] sm:$0xff] %vm490, %v487
    // Predicated region
    $region46: #{tpu_custom_call.1} parent=1 // pred_check
      _
    $region47: #{tpu_custom_call.1} parent=1 // pred_check_branch
      %494 = sbr.rel (0) target = $region49
    $region48: #{tpu_custom_call.1} parent=1 // pred_region
      _
    $region49: #{tpu_custom_call.1} parent=1 // pred_fallthru
      _
    // Predicated region
    $region50: #{tpu_custom_call.1} parent=1 // pred_check
      _
    $region51: #{tpu_custom_call.1} parent=1 // pred_check_branch
      %496 = sbr.rel (0) target = $region53
    $region52: #{tpu_custom_call.1} parent=1 // pred_region
      _
    $region53: #{tpu_custom_call.1} parent=1 // pred_fallthru
      _
    %497 = vsyncpa [#allocation3], 1
    %498 = vsyncpa [#allocation5], 1
    %499 = vsyncpa [#allocation8], 1

</llo_original>
